<compile_context>
chip_gen: v6e
topology: v6e:2x2x1
jax: 0.10.0
libtpu: 0.0.40
codegen_flags: <defaults>
</compile_context>

<pallas_src>
import functools

import jax
import jax.numpy as jnp
from jax.experimental import pallas as pl
from jax.experimental.pallas import tpu as pltpu


def _cdiv(a, b):
    return -(-a // b)


def _round_up(a, b):
    return _cdiv(a, b) * b


def _ce_kernel_single(x_ref, y_ref, out_ref, *, targeted, num_classes):
    """Whole class row fits in one block: plain stable LSE cross-entropy."""
    x = x_ref[...].astype(jnp.float32)                       # (TN, C)
    y = y_ref[...]                                           # (TN, 1) int32

    m = jnp.max(x, axis=-1, keepdims=True)                   # (TN, 1)
    lse = jnp.log(jnp.sum(jnp.exp(x - m), axis=-1, keepdims=True)) + m

    col = jax.lax.broadcasted_iota(jnp.int32, x.shape, 1)    # (TN, C)
    tgt = jnp.sum(jnp.where(col == y, x, 0.0), axis=-1, keepdims=True)

    valid = jnp.logical_and(y >= 0, y < num_classes)         # ignore_index rows
    loss = jnp.where(valid, lse - tgt, 0.0)
    if targeted:
        loss = -loss
    out_ref[...] = loss.astype(out_ref.dtype)


def _ce_kernel_online(x_ref, y_ref, out_ref, m_sc, l_sc, t_sc, *,
                      targeted, num_classes, tile_c):
    """Class dimension split across grid axis 1: online (flash-style) LSE."""
    ci = pl.program_id(1)
    nc = pl.num_programs(1)

    @pl.when(ci == 0)
    def _init():
        m_sc[...] = jnp.full_like(m_sc, -jnp.inf)
        l_sc[...] = jnp.zeros_like(l_sc)
        t_sc[...] = jnp.zeros_like(t_sc)

    x = x_ref[...].astype(jnp.float32)                       # (TN, TC)
    y = y_ref[...]                                           # (TN, 1) int32

    col = ci * tile_c + jax.lax.broadcasted_iota(jnp.int32, x.shape, 1)
    lane_ok = col < num_classes                              # mask padded lanes
    xm = jnp.where(lane_ok, x, -jnp.inf)

    m_prev = m_sc[...]
    m_new = jnp.maximum(m_prev, jnp.max(xm, axis=-1, keepdims=True))
    scale = jnp.exp(m_prev - m_new)
    p = jnp.exp(xm - m_new)                                  # masked lanes -> 0
    l_sc[...] = scale * l_sc[...] + jnp.sum(p, axis=-1, keepdims=True)
    t_sc[...] = t_sc[...] + jnp.sum(jnp.where(col == y, x, 0.0),
                                    axis=-1, keepdims=True)
    m_sc[...] = m_new

    @pl.when(ci == nc - 1)
    def _finalize():
        lse = jnp.log(l_sc[...]) + m_sc[...]
        valid = jnp.logical_and(y >= 0, y < num_classes)
        loss = jnp.where(valid, lse - t_sc[...], 0.0)
        if targeted:
            loss = -loss
        out_ref[...] = loss.astype(out_ref.dtype)


def ce_loss(x, y, *, targeted=False, tile_n=None, max_tile_c=8192,
            target_block_bytes=2 * 1024 * 1024):
    """Cross-entropy with reduction='none' (negated if targeted).

    x: (N, C) float logits (f32 or bf16 -- do NOT pre-upcast bf16, the kernel
       casts to f32 internally and bf16 halves HBM read traffic).
    y: (N,) integer class indices; out-of-range targets (e.g. -100) give 0.
    Returns (N,) float32 per-row loss.
    """
    N, C = x.shape
    y2 = y.astype(jnp.int32).reshape(N, 1)

    # ---- class tiling -------------------------------------------------------
    if C <= max_tile_c:
        tile_c, num_c = C, 1
    else:
        assert max_tile_c % 128 == 0, "max_tile_c must be a multiple of 128"
        tile_c = max_tile_c
        num_c = _cdiv(C, tile_c)

    # ---- row tiling: ~target_block_bytes of f32 logits per block ------------
    if tile_n is None:
        tn = (target_block_bytes // (tile_c * 4)) // 8 * 8
        tn = max(8, min(tn, 2048))
        # prefer >=2 row tiles when the batch allows it (v7x megacore sharding)
        tn = min(tn, max(8, _round_up(_cdiv(N, 2), 8)))
        tile_n = tn
    assert tile_n % 8 == 0 and tile_n >= 8

    num_n = _cdiv(N, tile_n)
    n_pad = num_n * tile_n
    if n_pad > N:
        # pad targets with an invalid class so padded rows produce 0 and the
        # (discarded) tail rows never read garbage target logits
        y2 = jnp.pad(y2, ((0, n_pad - N), (0, 0)), constant_values=-1)

    cost = pl.CostEstimate(
        flops=int(5 * N * C),
        transcendentals=int(N * C + N),
        bytes_accessed=int(N * C * x.dtype.itemsize + 8 * N))

    if num_c == 1:
        kernel = functools.partial(_ce_kernel_single,
                                   targeted=targeted, num_classes=C)
        grid_spec = pltpu.PrefetchScalarGridSpec(
            num_scalar_prefetch=0,
            grid=(num_n,),
            in_specs=[pl.BlockSpec((tile_n, C), lambda i: (i, 0)),
                      pl.BlockSpec((tile_n, 1), lambda i: (i, 0))],
            out_specs=pl.BlockSpec((tile_n, 1), lambda i: (i, 0)))
        dim_sem = ("parallel",)
    else:
        kernel = functools.partial(_ce_kernel_online, targeted=targeted,
                                   num_classes=C, tile_c=tile_c)
        grid_spec = pltpu.PrefetchScalarGridSpec(
            num_scalar_prefetch=0,
            grid=(num_n, num_c),                       # reduction axis last
            in_specs=[pl.BlockSpec((tile_n, tile_c), lambda i, c: (i, c)),
                      pl.BlockSpec((tile_n, 1), lambda i, c: (i, 0))],
            out_specs=pl.BlockSpec((tile_n, 1), lambda i, c: (i, 0)),
            scratch_shapes=[pltpu.VMEM((tile_n, 1), jnp.float32)] * 3)
        dim_sem = ("parallel", "arbitrary")

    out = pl.pallas_call(
        kernel,
        out_shape=jax.ShapeDtypeStruct((n_pad, 1), jnp.float32),
        grid_spec=grid_spec,
        compiler_params=pltpu.CompilerParams(
            dimension_semantics=dim_sem,
            vmem_limit_bytes=32 * 1024 * 1024),
        cost_estimate=cost,
    )(x, y2)
    return out.reshape(n_pad)[:N]


if __name__ == "__main__":
    key = jax.random.PRNGKey(0)
    k1, k2, k3, k4 = jax.random.split(key, 4)

    def reference(x, y, targeted, num_classes):
        logp = jax.nn.log_softmax(x.astype(jnp.float32), axis=-1)
        n = x.shape[0]
        y_safe = jnp.clip(y, 0, num_classes - 1)
        loss = -logp[jnp.arange(n), y_safe]
        valid = (y >= 0) & (y < num_classes)
        loss = jnp.where(valid, loss, 0.0)
        return -loss if targeted else loss

    # 1) small f32 case, single-class-block path, targeted & untargeted
    N1, C1 = 8, 128
    x1 = jax.random.normal(k1, (N1, C1), dtype=jnp.float32)
    y1 = jax.random.randint(k2, (N1,), 0, C1, dtype=jnp.int32)
    out1 = ce_loss(x1, y1, targeted=False)
    out1t = ce_loss(x1, y1, targeted=True)
    jax.block_until_ready((out1, out1t))
    ref1 = reference(x1, y1, False, C1)
    assert out1.shape == (N1,)
    assert jnp.allclose(out1, ref1, atol=1e-5, rtol=1e-5)
    assert jnp.allclose(out1t, -ref1, atol=1e-5, rtol=1e-5)

    # 2) bf16 logits, ragged batch, non-multiple-of-128 classes, ignored row
    N2, C2 = 13, 40
    x2 = jax.random.normal(k3, (N2, C2), dtype=jnp.bfloat16)
    y2 = jax.random.randint(k4, (N2,), 0, C2, dtype=jnp.int32)
    y2 = y2.at[3].set(-100)   # PyTorch default ignore_index -> 0 loss
    out2 = ce_loss(x2, y2, targeted=False)
    jax.block_until_ready(out2)
    ref2 = reference(x2, y2, False, C2)
    assert out2.shape == (N2,)
    assert jnp.allclose(out2, ref2, atol=1e-4, rtol=1e-4)
    assert float(out2[3]) == 0.0

    # 3) force the online-LSE class-split path (ragged last class block)
    N3, C3 = 16, 320
    kx, ky = jax.random.split(k1)
    x3 = jax.random.normal(kx, (N3, C3), dtype=jnp.float32)
    y3 = jax.random.randint(ky, (N3,), 0, C3, dtype=jnp.int32)
    out3 = ce_loss(x3, y3, targeted=True, max_tile_c=128)
    jax.block_until_ready(out3)
    ref3 = reference(x3, y3, True, C3)
    assert jnp.allclose(out3, ref3, atol=1e-5, rtol=1e-5)

    print("KERNEL_OK")
</pallas_src>

<mosaic_0001>
module attributes {stable_mosaic.version = 11 : i64} {
  func.func @_ce_kernel_single(%arg0: i32, %arg1: memref<8x128xf32, #tpu.memory_space<vmem>>, %arg2: memref<8x1xi32, #tpu.memory_space<vmem>>, %arg3: memref<8x1xf32, #tpu.memory_space<vmem>>) attributes {dimension_semantics = [#tpu.dimension_semantics<parallel>], iteration_bounds = array<i64: 1>, scalar_prefetch = 0 : i64, scratch_operands = 0 : i64, tpu.core_type = #tpu.core_type<tc>, window_params = [{transform_indices = @transform_0, window_bounds = array<i64: 8, 128>}, {transform_indices = @transform_1, window_bounds = array<i64: 8, 1>}, {transform_indices = @transform_2, window_bounds = array<i64: 8, 1>}]} {
    %c0 = arith.constant 0 : index
    %c0_0 = arith.constant 0 : index
    %0 = vector.load %arg1[%c0, %c0_0] : memref<8x128xf32, #tpu.memory_space<vmem>>, vector<8x128xf32>
    %c0_1 = arith.constant 0 : index
    %c0_2 = arith.constant 0 : index
    %1 = vector.load %arg2[%c0_1, %c0_2] : memref<8x1xi32, #tpu.memory_space<vmem>>, vector<8x1xi32>
    %cst = arith.constant dense<0xFF800000> : vector<8xf32>
    %2 = vector.multi_reduction <maximumf>, %0, %cst [1] : vector<8x128xf32> to vector<8xf32>
    %3 = vector.shape_cast %2 : vector<8xf32> to vector<8x1xf32>
    %4 = vector.broadcast %3 : vector<8x1xf32> to vector<8x128xf32>
    %5 = arith.subf %0, %4 : vector<8x128xf32>
    %6 = math.exp %5 : vector<8x128xf32>
    %cst_3 = arith.constant dense<0.000000e+00> : vector<8xf32>
    %7 = vector.multi_reduction <add>, %6, %cst_3 [1] : vector<8x128xf32> to vector<8xf32>
    %8 = vector.shape_cast %7 : vector<8xf32> to vector<8x1xf32>
    %9 = math.log %8 : vector<8x1xf32>
    %10 = arith.addf %9, %3 : vector<8x1xf32>
    %11 = tpu.iota {dimensions = array<i32: 1>} : vector<8x128xi32>
    %12 = vector.broadcast %1 : vector<8x1xi32> to vector<8x128xi32>
    %13 = arith.cmpi eq, %11, %12 : vector<8x128xi32>
    %cst_4 = arith.constant 0.000000e+00 : f32
    %14 = vector.broadcast %cst_4 : f32 to vector<8x128xf32>
    %15 = arith.select %13, %0, %14 : vector<8x128xi1>, vector<8x128xf32>
    %cst_5 = arith.constant dense<0.000000e+00> : vector<8xf32>
    %16 = vector.multi_reduction <add>, %15, %cst_5 [1] : vector<8x128xf32> to vector<8xf32>
    %17 = vector.shape_cast %16 : vector<8xf32> to vector<8x1xf32>
    %c0_i32 = arith.constant 0 : i32
    %18 = vector.broadcast %c0_i32 : i32 to vector<8x1xi32>
    %19 = arith.cmpi sge, %1, %18 : vector<8x1xi32>
    %c128_i32 = arith.constant 128 : i32
    %20 = vector.broadcast %c128_i32 : i32 to vector<8x1xi32>
    %21 = arith.cmpi slt, %1, %20 : vector<8x1xi32>
    %22 = arith.andi %19, %21 : vector<8x1xi1>
    %23 = arith.subf %10, %17 : vector<8x1xf32>
    %cst_6 = arith.constant 0.000000e+00 : f32
    %24 = vector.broadcast %cst_6 : f32 to vector<8x1xf32>
    %25 = arith.select %22, %23, %24 : vector<8x1xi1>, vector<8x1xf32>
    %c0_7 = arith.constant 0 : index
    %c0_8 = arith.constant 0 : index
    %26 = vector.load %arg3[%c0_7, %c0_8] : memref<8x1xf32, #tpu.memory_space<vmem>>, vector<8x1xf32>
    tpu.vector_store %arg3[%c0_7, %c0_8], %25 {strides = array<i32>} : memref<8x1xf32, #tpu.memory_space<vmem>>, vector<8x1xf32>,
    return
  }
  func.func @transform_0(%arg0: i32) -> (i32, i32) {
    %c0_i32 = arith.constant 0 : i32
    %c0_i32_0 = arith.constant 0 : i32
    return %arg0, %c0_i32 : i32, i32
  }
  func.func @transform_1(%arg0: i32) -> (i32, i32) {
    %c0_i32 = arith.constant 0 : i32
    %c0_i32_0 = arith.constant 0 : i32
    return %arg0, %c0_i32 : i32, i32
  }
  func.func @transform_2(%arg0: i32) -> (i32, i32) {
    %c0_i32 = arith.constant 0 : i32
    %c0_i32_0 = arith.constant 0 : i32
    return %arg0, %c0_i32 : i32, i32
  }
}

</mosaic_0001>

<llo_original>
// kernel: tpu_custom_call.1
$region0: #{tpu_custom_call.1}
  #allocation0 [shape = 'u32[]', space=smem, size = 0x4, offset = 0x4, fixed_abs, tag = 'smem constant byte address 0x4 - core index']
  #allocation1 [shape = 'u32[144,128]{1,0:T(1,128)}', space=vmem, size = 0x12000, scoped, tag = 'internal scratch']
  %s0 = inlined_call_operand.vmem [shape: f32[8,128], index: 0, kind: input, shape index: {}]
  %s1 = inlined_call_operand.vmem [shape: s32[8,1], index: 1, kind: input, shape index: {}]
  %s2 = inlined_call_operand.vmem [shape: f32[8,1], index: 2, kind: output, shape index: {}]
  %s3 = sld [smem:[#allocation0]]
  $region18: #{tpu_custom_call.1} parent=0
    _
  %s5 = ssub.s32 1, %s3
  %s6 = scalar_select 0, %s5, %s3
  // Predicated region
  $region2: #{tpu_custom_call.1} parent=0 // pred_check
    _
  $region3: #{tpu_custom_call.1} parent=0 // pred_check_branch
    %8 = sbr.rel (0) target = $region5
  $region4: #{tpu_custom_call.1} parent=0 // pred_region
    _
  $region5: #{tpu_custom_call.1} parent=0 // pred_fallthru
    _
  // Predicated region
  $region6: #{tpu_custom_call.1} parent=0 // pred_check
    _
  $region7: #{tpu_custom_call.1} parent=0 // pred_check_branch
    %10 = sbr.rel (0) target = $region9
  $region8: #{tpu_custom_call.1} parent=0 // pred_region
    _
  $region9: #{tpu_custom_call.1} parent=0 // pred_fallthru
    _
  %v11 = vld [vmem:[%s0] sm:$0xff]
  %v12 = vld [vmem:[%s1] sm:$0xff]
  %13 = vmax.xlane.f32.xlu0 %v11
  %v14 = vpop.xlane.xlu0 %13
  %v15 = vsub.f32 %v11, %v14
  %v16 = vmul.f32 %v15, 1.442695
  %v17 = vpow.pop %v16
  %18 = vadd.xlane.f32.xlu0 %v17
  %v19 = vpop.xlane.xlu0 %18
  %v20 = vlog2.pop %v19
  %v21 = vmul.f32 %v20, 0.6931472
  %v22 = vadd.f32 %v21, %v14
  %v23 = vlaneseq
  %v24 = vand.u32 %v23, 127
  %25 = vset.pattern.permute.xlu0 0
  %26 = vperm.xlu0 %25, %v12
  %v27 = vpop.permute.xlu0 %26
  %vm28 = vcmp.eq.s32.totalorder %v24, %v27
  %v29 = vsel %vm28, %v11, 0.0
  %30 = vadd.xlane.f32.xlu0 %v29
  %v31 = vpop.xlane.xlu0 %30
  %vm32 = vcmp.ge.s32.totalorder %v12, 0
  %vm33 = vcmp.lt.s32.totalorder %v12, 128
  %vm34 = vmand %vm32, %vm33
  %v35 = vsub.f32 %v22, %v31
  %v36 = vsel %vm34, %v35, 0.0
  %vm37 = vcmask 7168
  %38 = vst.msk [vmem:[%s2] sm:$0xff] %vm37, %v36
  // Predicated region
  $region10: #{tpu_custom_call.1} parent=0 // pred_check
    _
  $region11: #{tpu_custom_call.1} parent=0 // pred_check_branch
    %40 = sbr.rel (0) target = $region13
  $region12: #{tpu_custom_call.1} parent=0 // pred_region
    _
  $region13: #{tpu_custom_call.1} parent=0 // pred_fallthru
    _
  // Predicated region
  $region14: #{tpu_custom_call.1} parent=0 // pred_check
    _
  $region15: #{tpu_custom_call.1} parent=0 // pred_check_branch
    %42 = sbr.rel (0) target = $region17
  $region16: #{tpu_custom_call.1} parent=0 // pred_region
    _
  $region17: #{tpu_custom_call.1} parent=0 // pred_fallthru
    _

</llo_original>
